<compile_context>
chip_gen: v7x
topology: tpu7x:2x2x1
jax: 0.10.0
libtpu: 0.0.40
codegen_flags: <defaults>
</compile_context>

<pallas_src>
import jax
import jax.numpy as jnp
from jax import lax
from jax.experimental import pallas as pl
from jax.experimental.pallas import tpu as pltpu


# --------------------------- Hardware-aware sizing -------------------------- #

def _round_up(x, m):
    return ((x + m - 1) // m) * m


def _sublane_multiple(dtype):
    """Minimum row-tile multiple for a dtype: 8 (32-bit), 16 (bf16), 32 (8-bit)."""
    return 8 * max(1, 4 // jnp.dtype(dtype).itemsize)


def _vmem_capacity_bytes():
    """Per-TensorCore VMEM capacity with a generation-aware fallback."""
    kind = ""
    try:
        kind = jax.devices()[0].device_kind.lower()
    except Exception:
        pass
    is_v7 = ("v7" in kind) or ("7x" in kind)
    cap = None
    try:
        info = pltpu.get_tpu_info()
        cap = int(getattr(info, "vmem_capacity_bytes", 0)) or None
    except Exception:
        cap = None
    if cap is None:
        # v5e / v6e have 128 MiB of VMEM per TensorCore; v7x has 64 MiB per core.
        cap = (64 << 20) if is_v7 else (128 << 20)
    if is_v7:
        # The query may report per-chip capacity; clamp to the 64 MiB per-core VMEM.
        cap = min(cap, 64 << 20)
    return cap


def _vmem_budget_bytes():
    # ~40% of per-core VMEM for the pipelined working set; leaves headroom for
    # compiler-internal scratch and the second pipeline stage.
    return int(_vmem_capacity_bytes() * 0.4)


def _vmem_limit_bytes(buffer_bytes):
    cap = _vmem_capacity_bytes()
    return int(min(max(buffer_bytes + (4 << 20), 32 << 20), int(cap * 0.9)))


def _pick_row_tile(n, d, n_bufs, dtype, target=1024):
    """Row tile for the mem-bound elementwise/reduction kernels.

    Targets 512-1024 rows (measured ~85% of HBM roofline) while fitting the
    double-buffered working set in the VMEM budget, honoring the dtype's
    sublane packing multiple, and keeping >= 4 grid steps when there is enough
    work (pipeline overlap + both v7x TensorCores)."""
    itemsize = jnp.dtype(dtype).itemsize
    sub = _sublane_multiple(dtype)
    per_row = n_bufs * 2 * d * itemsize + 2 * d * 4      # dbuf tiles + f32 temps
    cap_rows = max(sub, _vmem_budget_bytes() // max(per_row, 1))
    tr = min(target, cap_rows, _round_up(n, sub))
    quarter = _round_up(pl.cdiv(n, 4), sub)              # prefer >= 4 grid steps ...
    if quarter >= 256:                                   # ... but never tiny tiles
        tr = min(tr, quarter)
    return max(sub, (tr // sub) * sub)


def _largest_divisor_tile(dim, pref, mult):
    """Largest multiple of `mult` that divides `dim` and is <= pref; else full dim."""
    if dim % mult != 0:
        return dim
    t = (min(pref, dim) // mult) * mult
    while t >= mult:
        if dim % t == 0:
            return t
        t -= mult
    return dim


def _pick_matmul_tiles(n, d_in, d_out, x_dtype, w_dtype, out_dtype):
    """MXU-friendly tiles for the fused norm+matmul+residual kernel."""
    budget = _vmem_budget_bytes()
    xi = jnp.dtype(x_dtype).itemsize
    wi = jnp.dtype(w_dtype).itemsize
    oi = jnp.dtype(out_dtype).itemsize
    sub = _sublane_multiple(x_dtype)

    tn = _largest_divisor_tile(d_out, 512, 128)

    tk, tm_cap = d_in, sub
    for tk_pref in (2048, 1024, 512, 256, 128):          # bigger K tile when it fits
        tk = _largest_divisor_tile(d_in, tk_pref, 128)
        fixed = 2 * tk * tn * wi + 4 * (2 * tk + tn) * 4
        per_row = (2 * tk * xi + 2 * tn * xi + tn * 4 + 2 * tn * oi + 4 * tk + 64)
        tm_cap = max(sub, (budget - fixed) // per_row) if budget > fixed else sub
        if tm_cap >= 128 or tk == d_in:
            break

    if n >= 128 and tm_cap >= 128:
        tm = max(128, (min(512, tm_cap, n) // 128) * 128)   # multiple of 128, prefer 512
    else:
        tm = max(sub, min(_round_up(n, sub), (tm_cap // sub) * sub))
    return tm, tn, tk


# ------------------------------ Pallas kernels ------------------------------ #

def _layernorm_kernel(x_ref, a_ref, b_ref, o_ref):
    """Row-wise LayerNorm over the last axis (torch.std semantics: unbiased)."""
    x = x_ref[...].astype(jnp.float32)                       # (TR, D)
    d = x.shape[-1]
    mean = jnp.mean(x, axis=-1, keepdims=True)
    centered = x - mean
    var = jnp.sum(centered * centered, axis=-1, keepdims=True) * (1.0 / max(d - 1, 1))
    # eps=1e-16 on std is a no-op in f32; rstd=0 for constant rows matches PyTorch.
    rstd = jnp.where(var > 0, lax.rsqrt(var), 0.0)
    o_ref[...] = (a_ref[...] * centered * rstd + b_ref[...]).astype(o_ref.dtype)


def _row_stats_kernel(x_ref, mean_ref, rstd_ref):
    """Per-row mean and reciprocal std (unbiased) -> (TR, 1) f32 each."""
    x = x_ref[...].astype(jnp.float32)                       # (TR, D)
    d = x.shape[-1]
    mean = jnp.mean(x, axis=-1, keepdims=True)
    centered = x - mean
    var = jnp.sum(centered * centered, axis=-1, keepdims=True) * (1.0 / max(d - 1, 1))
    mean_ref[...] = mean
    rstd_ref[...] = jnp.where(var > 0, lax.rsqrt(var), 0.0)


def _residual_add_kernel(x_ref, y_ref, o_ref):
    """o = x + y  (dropout in eval mode == identity)."""
    o_ref[...] = x_ref[...] + y_ref[...]


def _norm_linear_residual_kernel(xr_ref, xl_ref, mean_ref, rstd_ref,
                                 a_ref, b_ref, w_ref, bias_ref, o_ref, acc_ref):
    """o = x + (LayerNorm(x) @ w + bias), with the LayerNorm applied to the LHS
    tile on the fly (VPU work hidden under the MXU) and the residual add fused
    into the matmul epilogue."""
    k = pl.program_id(2)

    @pl.when(k == 0)
    def _():
        acc_ref[...] = jnp.zeros_like(acc_ref)

    xl = xl_ref[...].astype(jnp.float32)                     # (tm, tk)
    h = (xl - mean_ref[...]) * rstd_ref[...] * a_ref[...] + b_ref[...]
    acc_ref[...] += jnp.dot(h.astype(w_ref.dtype), w_ref[...],
                            preferred_element_type=jnp.float32)

    @pl.when(k == pl.num_programs(2) - 1)
    def _():
        out = acc_ref[...] + bias_ref[...] + xr_ref[...].astype(jnp.float32)
        o_ref[...] = out.astype(o_ref.dtype)


# -------------------------------- Wrappers ---------------------------------- #

def layernorm(x, a_2, b_2, *, row_tile=None):
    """x: (N, D); a_2, b_2: (D,). Rows padded (not asserted) to the tile."""
    n, d = x.shape
    tr = row_tile or _pick_row_tile(n, d, n_bufs=2, dtype=x.dtype)
    n_pad = _round_up(n, tr)
    xp = x if n_pad == n else jnp.pad(x, ((0, n_pad - n), (0, 0)))
    a2 = a_2.reshape(1, d).astype(jnp.float32)
    b2 = b_2.reshape(1, d).astype(jnp.float32)
    itemsize = jnp.dtype(x.dtype).itemsize
    buf = 2 * 2 * tr * d * itemsize + 2 * tr * d * 4 + 2 * 2 * d * 4
    out = pl.pallas_call(
        _layernorm_kernel,
        out_shape=jax.ShapeDtypeStruct((n_pad, d), x.dtype),
        grid=(n_pad // tr,),
        in_specs=[
            pl.BlockSpec((tr, d), lambda i: (i, 0)),
            pl.BlockSpec((1, d), lambda i: (0, 0)),
            pl.BlockSpec((1, d), lambda i: (0, 0)),
        ],
        out_specs=pl.BlockSpec((tr, d), lambda i: (i, 0)),
        compiler_params=pltpu.CompilerParams(
            dimension_semantics=("parallel",),
            vmem_limit_bytes=_vmem_limit_bytes(buf)),
    )(xp, a2, b2)
    return out[:n] if n_pad != n else out


def row_stats(x, *, row_tile=None):
    """Per-row mean / rstd of x: (N, D) -> two (N, 1) f32 arrays."""
    n, d = x.shape
    tr = row_tile or _pick_row_tile(n, d, n_bufs=1, dtype=x.dtype)
    n_pad = _round_up(n, tr)
    xp = x if n_pad == n else jnp.pad(x, ((0, n_pad - n), (0, 0)))
    itemsize = jnp.dtype(x.dtype).itemsize
    buf = 2 * tr * d * itemsize + 2 * tr * d * 4 + 4 * 2 * tr * 4
    mean, rstd = pl.pallas_call(
        _row_stats_kernel,
        out_shape=(jax.ShapeDtypeStruct((n_pad, 1), jnp.float32),
                   jax.ShapeDtypeStruct((n_pad, 1), jnp.float32)),
        grid=(n_pad // tr,),
        in_specs=[pl.BlockSpec((tr, d), lambda i: (i, 0))],
        out_specs=(pl.BlockSpec((tr, 1), lambda i: (i, 0)),
                   pl.BlockSpec((tr, 1), lambda i: (i, 0))),
        compiler_params=pltpu.CompilerParams(
            dimension_semantics=("parallel",),
            vmem_limit_bytes=_vmem_limit_bytes(buf)),
    )(xp)
    if n_pad != n:
        mean, rstd = mean[:n], rstd[:n]
    return mean, rstd


def residual_add(x, y, *, row_tile=None):
    """x, y: (N, D) -> x + y (generic-sublayer fallback path)."""
    n, d = x.shape
    tr = row_tile or _pick_row_tile(n, d, n_bufs=3, dtype=x.dtype)
    n_pad = _round_up(n, tr)
    if n_pad != n:
        x = jnp.pad(x, ((0, n_pad - n), (0, 0)))
        y = jnp.pad(y, ((0, n_pad - n), (0, 0)))
    itemsize = jnp.dtype(x.dtype).itemsize
    buf = 3 * 2 * tr * d * itemsize
    out = pl.pallas_call(
        _residual_add_kernel,
        out_shape=jax.ShapeDtypeStruct((n_pad, d), x.dtype),
        grid=(n_pad // tr,),
        in_specs=[
            pl.BlockSpec((tr, d), lambda i: (i, 0)),
            pl.BlockSpec((tr, d), lambda i: (i, 0)),
        ],
        out_specs=pl.BlockSpec((tr, d), lambda i: (i, 0)),
        compiler_params=pltpu.CompilerParams(
            dimension_semantics=("parallel",),
            vmem_limit_bytes=_vmem_limit_bytes(buf)),
    )(x, y)
    return out[:n] if n_pad != n else out


def linear_residual_norm(x, a_2, b_2, w, bias):
    """out = x + (LayerNorm(x) @ w + bias), without materializing LayerNorm(x)
    in HBM.  x: (N, D); w: (D, D); bias: (D,)."""
    n, d_in = x.shape
    d_out = w.shape[1]
    tm, tn, tk = _pick_matmul_tiles(n, d_in, d_out, x.dtype, w.dtype, x.dtype)
    # Keep >= 2 parallel grid steps when possible so v7x's 2 TensorCores both work.
    if tm >= 256 and pl.cdiv(n, tm) * (d_out // tn) < 2:
        tm = max(128, ((tm // 2) // 128) * 128)

    n_pad = _round_up(n, tm)
    xp = x if n_pad == n else jnp.pad(x, ((0, n_pad - n), (0, 0)))

    # Tiny row-stats pass: one read of x, (N,1) outputs (negligible HBM traffic).
    mean, rstd = row_stats(x)
    if n_pad != n:
        mean = jnp.pad(mean, ((0, n_pad - n), (0, 0)))
        rstd = jnp.pad(rstd, ((0, n_pad - n), (0, 0)))

    a2 = a_2.reshape(1, d_in).astype(jnp.float32)
    b2 = b_2.reshape(1, d_in).astype(jnp.float32)
    bias2 = bias.reshape(1, d_out).astype(jnp.float32)

    xi = jnp.dtype(x.dtype).itemsize
    wi = jnp.dtype(w.dtype).itemsize
    buf = (2 * (tm * tn + tm * tk) * xi       # residual + LHS (double-buffered)
           + 2 * tk * tn * wi                 # weights (double-buffered)
           + 2 * tm * tn * xi                 # output (double-buffered)
           + tm * tn * 4                      # f32 accumulator
           + 4 * tm * 4 + 4 * (2 * tk + tn) * 4)

    out = pl.pallas_call(
        _norm_linear_residual_kernel,
        out_shape=jax.ShapeDtypeStruct((n_pad, d_out), x.dtype),
        grid=(n_pad // tm, d_out // tn, d_in // tk),
        in_specs=[
            pl.BlockSpec((tm, tn), lambda i, j, k: (i, j)),   # x (residual)
            pl.BlockSpec((tm, tk), lambda i, j, k: (i, k)),   # x (LHS, re-normed)
            pl.BlockSpec((tm, 1), lambda i, j, k: (i, 0)),    # mean
            pl.BlockSpec((tm, 1), lambda i, j, k: (i, 0)),    # rstd
            pl.BlockSpec((1, tk), lambda i, j, k: (0, k)),    # a_2
            pl.BlockSpec((1, tk), lambda i, j, k: (0, k)),    # b_2
            pl.BlockSpec((tk, tn), lambda i, j, k: (k, j)),   # w
            pl.BlockSpec((1, tn), lambda i, j, k: (0, j)),    # bias
        ],
        out_specs=pl.BlockSpec((tm, tn), lambda i, j, k: (i, j)),
        scratch_shapes=[pltpu.VMEM((tm, tn), jnp.float32)],
        compiler_params=pltpu.CompilerParams(
            dimension_semantics=("parallel", "parallel", "arbitrary"),
            vmem_limit_bytes=_vmem_limit_bytes(buf)),
    )(xp, xp, mean, rstd, a2, b2, w, bias2)
    return out[:n] if n_pad != n else out


class SublayerConnection:
    """JAX/Pallas port of the PyTorch SublayerConnection module (eval mode)."""

    def __init__(self, size, dropout):
        self.a_2 = jnp.ones((size,), dtype=jnp.float32)
        self.b_2 = jnp.zeros((size,), dtype=jnp.float32)
        self.eps = 1e-16           # added to std in PyTorch; a no-op in f32
        self.dropout_p = dropout   # eval mode: identity

    def norm(self, x):
        b, s, d = x.shape
        return layernorm(x.reshape(b * s, d), self.a_2, self.b_2).reshape(b, s, d)

    def __call__(self, x, sublayer):
        """Generic path: x (B,S,D); sublayer: callable (B,S,D)->(B,S,D)."""
        b, s, d = x.shape
        y = sublayer(self.norm(x))
        out = residual_add(x.reshape(b * s, d), y.reshape(b * s, d))
        return out.reshape(b, s, d)

    def call_linear(self, x, w, bias):
        """Fused path when the sublayer is a linear layer: the LayerNorm is
        applied to the matmul LHS in-kernel and the residual add lives in the
        matmul epilogue (no HBM round trip of the normed activations)."""
        b, s, d = x.shape
        out = linear_residual_norm(x.reshape(b * s, d), self.a_2, self.b_2, w, bias)
        return out.reshape(b, s, d)


# ----------------------------- Reference (JAX) ------------------------------ #

def _reference(x, a_2, b_2, eps, sublayer):
    mean = jnp.mean(x, axis=-1, keepdims=True)
    var = jnp.sum((x - mean) ** 2, axis=-1, keepdims=True) / (x.shape[-1] - 1)
    std = jnp.sqrt(var)
    normed = a_2 * (x - mean) / (std + eps) + b_2
    return x + sublayer(normed)


# --------------------------------- Main ------------------------------------- #

if __name__ == "__main__":
    B, S, D = 2, 8, 32
    key = jax.random.PRNGKey(0)
    kx, kw, kb = jax.random.split(key, 3)

    x = jax.random.normal(kx, (B, S, D), dtype=jnp.float32)

    # Example sublayer: deterministic linear layer D -> D.
    w = jax.random.normal(kw, (D, D), dtype=jnp.float32) * 0.05
    bias = jax.random.normal(kb, (D,), dtype=jnp.float32) * 0.01
    sublayer = lambda h: jnp.dot(h, w) + bias

    mod = SublayerConnection(size=D, dropout=0.1)

    # Generic path (arbitrary sublayer callable): layernorm + residual_add kernels.
    out_generic = jax.block_until_ready(mod(x, sublayer))
    # Fused path (linear sublayer): row-stats + norm-in-matmul + residual epilogue.
    out_fused = jax.block_until_ready(mod.call_linear(x, w, bias))

    ref = _reference(x, mod.a_2, mod.b_2, mod.eps, sublayer)
    assert out_generic.shape == (B, S, D) and out_fused.shape == (B, S, D)
    assert jnp.allclose(out_generic, ref, atol=1e-4, rtol=1e-4), "generic path mismatch"
    assert jnp.allclose(out_fused, ref, atol=1e-4, rtol=1e-4), "fused path mismatch"

    print("KERNEL_OK")
</pallas_src>

<mosaic_0001>
module attributes {stable_mosaic.version = 11 : i64} {
  func.func @_layernorm_kernel(%arg0: i32, %arg1: memref<16x32xf32, #tpu.memory_space<vmem>>, %arg2: memref<1x32xf32, #tpu.memory_space<vmem>>, %arg3: memref<1x32xf32, #tpu.memory_space<vmem>>, %arg4: memref<16x32xf32, #tpu.memory_space<vmem>>) attributes {dimension_semantics = [#tpu.dimension_semantics<parallel>], iteration_bounds = array<i64: 1>, scalar_prefetch = 0 : i64, scratch_operands = 0 : i64, tpu.core_type = #tpu.core_type<tc>, window_params = [{transform_indices = @transform_0, window_bounds = array<i64: 16, 32>}, {pipeline_mode = #tpu.pipeline_mode<synchronous>, transform_indices = @transform_1, window_bounds = array<i64: 1, 32>}, {pipeline_mode = #tpu.pipeline_mode<synchronous>, transform_indices = @transform_2, window_bounds = array<i64: 1, 32>}, {transform_indices = @transform_3, window_bounds = array<i64: 16, 32>}]} {
    %c0 = arith.constant 0 : index
    %c0_0 = arith.constant 0 : index
    %0 = vector.load %arg1[%c0, %c0_0] : memref<16x32xf32, #tpu.memory_space<vmem>>, vector<16x32xf32>
    %cst = arith.constant dense<0.000000e+00> : vector<16xf32>
    %1 = vector.multi_reduction <add>, %0, %cst [1] : vector<16x32xf32> to vector<16xf32>
    %2 = vector.shape_cast %1 : vector<16xf32> to vector<16x1xf32>
    %cst_1 = arith.constant 3.200000e+01 : f32
    %3 = vector.broadcast %cst_1 : f32 to vector<16x1xf32>
    %4 = arith.divf %2, %3 : vector<16x1xf32>
    %5 = vector.broadcast %4 : vector<16x1xf32> to vector<16x32xf32>
    %6 = arith.subf %0, %5 : vector<16x32xf32>
    %7 = arith.mulf %6, %6 : vector<16x32xf32>
    %cst_2 = arith.constant dense<0.000000e+00> : vector<16xf32>
    %8 = vector.multi_reduction <add>, %7, %cst_2 [1] : vector<16x32xf32> to vector<16xf32>
    %9 = vector.shape_cast %8 : vector<16xf32> to vector<16x1xf32>
    %cst_3 = arith.constant 0.0322580636 : f32
    %10 = vector.broadcast %cst_3 : f32 to vector<16x1xf32>
    %11 = arith.mulf %9, %10 : vector<16x1xf32>
    %cst_4 = arith.constant 0.000000e+00 : f32
    %12 = vector.broadcast %cst_4 : f32 to vector<16x1xf32>
    %13 = arith.cmpf ogt, %11, %12 : vector<16x1xf32>
    %14 = math.rsqrt %11 : vector<16x1xf32>
    %cst_5 = arith.constant 0.000000e+00 : f32
    %15 = vector.broadcast %cst_5 : f32 to vector<16x1xf32>
    %16 = arith.select %13, %14, %15 : vector<16x1xi1>, vector<16x1xf32>
    %c0_6 = arith.constant 0 : index
    %c0_7 = arith.constant 0 : index
    %17 = vector.load %arg2[%c0_6, %c0_7] : memref<1x32xf32, #tpu.memory_space<vmem>>, vector<1x32xf32>
    %18 = vector.broadcast %17 : vector<1x32xf32> to vector<16x32xf32>
    %19 = arith.mulf %18, %6 : vector<16x32xf32>
    %20 = vector.broadcast %16 : vector<16x1xf32> to vector<16x32xf32>
    %21 = arith.mulf %19, %20 : vector<16x32xf32>
    %c0_8 = arith.constant 0 : index
    %c0_9 = arith.constant 0 : index
    %22 = vector.load %arg3[%c0_8, %c0_9] : memref<1x32xf32, #tpu.memory_space<vmem>>, vector<1x32xf32>
    %23 = vector.broadcast %22 : vector<1x32xf32> to vector<16x32xf32>
    %24 = arith.addf %21, %23 : vector<16x32xf32>
    %c0_10 = arith.constant 0 : index
    %c0_11 = arith.constant 0 : index
    %25 = vector.load %arg4[%c0_10, %c0_11] : memref<16x32xf32, #tpu.memory_space<vmem>>, vector<16x32xf32>
    tpu.vector_store %arg4[%c0_10, %c0_11], %24 {strides = array<i32>} : memref<16x32xf32, #tpu.memory_space<vmem>>, vector<16x32xf32>,
    return
  }
  func.func @transform_0(%arg0: i32) -> (i32, i32) {
    %c0_i32 = arith.constant 0 : i32
    %c0_i32_0 = arith.constant 0 : i32
    return %arg0, %c0_i32 : i32, i32
  }
  func.func @transform_1(%arg0: i32) -> (i32, i32) {
    %c0_i32 = arith.constant 0 : i32
    %c0_i32_0 = arith.constant 0 : i32
    %c0_i32_1 = arith.constant 0 : i32
    return %c0_i32, %c0_i32_0 : i32, i32
  }
  func.func @transform_2(%arg0: i32) -> (i32, i32) {
    %c0_i32 = arith.constant 0 : i32
    %c0_i32_0 = arith.constant 0 : i32
    %c0_i32_1 = arith.constant 0 : i32
    return %c0_i32, %c0_i32_0 : i32, i32
  }
  func.func @transform_3(%arg0: i32) -> (i32, i32) {
    %c0_i32 = arith.constant 0 : i32
    %c0_i32_0 = arith.constant 0 : i32
    return %arg0, %c0_i32 : i32, i32
  }
}

</mosaic_0001>

<llo_original>
// kernel: tpu_custom_call.1
$region0: #{tpu_custom_call.1}
  #allocation0 [shape = 'u32[]', space=smem, size = 0x4, offset = 0x4, fixed_abs, tag = 'smem constant byte address 0x4 - core index']
  #allocation1 [shape = 'u32[144,128]{1,0:T(1,128)}', space=vmem, size = 0x12000, scoped, tag = 'internal scratch']
  %s0 = inlined_call_operand.hbm [shape: f32[16,32], index: 0, kind: input, shape index: {}]
  %s1 = inlined_call_operand.vmem [shape: f32[1,32], index: 1, kind: input, shape index: {}]
  %s2 = inlined_call_operand.vmem [shape: f32[1,32], index: 2, kind: input, shape index: {}]
  %s3 = inlined_call_operand.hbm [shape: f32[16,32], index: 3, kind: output, shape index: {}]
  %s4 = sld [smem:[#allocation0]]
  $region26: #{tpu_custom_call.1} parent=0
    _
  %s6 = ssub.s32 1, %s4
  %s7 = scalar_select 0, %s6, %s4
  $region1: #{tpu_custom_call.1} parent=0
    #allocation2 [shape = 'u8[8192]{0}', space=vmem, size = 0x2000, scoped, tag = 'input window, operand 0, single buffered']
    #allocation3 [shape = 's32[1]{0}', space=sflag, size = 0x4, scoped, tag = 'scoped memory for tpu_custom_call.1']
    #allocation4 [shape = 's32[1]{0}', space=sflag, size = 0x4, scoped, tag = 'scoped memory for tpu_custom_call.1']
    #allocation5 [shape = 'u8[8192]{0}', space=vmem, size = 0x2000, scoped, tag = 'output window, operand 0, single buffered']
    %8 = vsyncpa [#allocation3], 0
    %9 = vsyncpa [#allocation4], 0
    // Predicated region
    $region2: #{tpu_custom_call.1} parent=1 // pred_check
      _
    $region3: #{tpu_custom_call.1} parent=1 // pred_check_branch
      %11 = sbr.rel (0) target = $region5
    $region4: #{tpu_custom_call.1} parent=1 // pred_region
      %s13 = ssub.s32 256, 256
      %14 = vsyncadd [#allocation3], %s13
      %s15 = sshll.u32 [#allocation2], 4
      %s16 = int_to_ptr.vmem [resolvable:$true] %s15
      %21 = dma.hbm_to_vmem [thread:$0]  %s0, 256, %s16, [#allocation3], 128, 128, 8
    $region5: #{tpu_custom_call.1} parent=1 // pred_fallthru
      _
    // Predicated region
    $region6: #{tpu_custom_call.1} parent=1 // pred_check
      _
    $region7: #{tpu_custom_call.1} parent=1 // pred_check_branch
      %23 = sbr.rel (0) target = $region9
    $region8: #{tpu_custom_call.1} parent=1 // pred_region
      _
    $region9: #{tpu_custom_call.1} parent=1 // pred_fallthru
      _
    // Predicated region
    $region10: #{tpu_custom_call.1} parent=1 // pred_check
      _
    $region11: #{tpu_custom_call.1} parent=1 // pred_check_branch
      %25 = sbr.rel (0) target = $region13
    $region12: #{tpu_custom_call.1} parent=1 // pred_region
      _
    $region13: #{tpu_custom_call.1} parent=1 // pred_fallthru
      _
    // Predicated region
    $region14: #{tpu_custom_call.1} parent=1 // pred_check
      _
    $region15: #{tpu_custom_call.1} parent=1 // pred_check_branch
      %27 = sbr.rel (0) target = $region17
    $region16: #{tpu_custom_call.1} parent=1 // pred_region
      %28 = dma.done [#allocation3], 256
    $region17: #{tpu_custom_call.1} parent=1 // pred_fallthru
      _
    %v29 = vld [vmem:[#allocation2] sm:$0xff]
    %v30 = vld [vmem:[#allocation2 + $0x8] sm:$0xff]
    %vm31 = vcmask 261120
    %v32 = vsel %vm31, %v29, 0.0
    %33 = vadd.xlane.f32.xlu0 %v32
    %v34 = vpop.xlane.xlu0 %33
    %v35 = vsel %vm31, %v30, 0.0
    %36 = vadd.xlane.f32.xlu0 %v35
    %v37 = vpop.xlane.xlu0 %36
    %v38 = vrcp.pop 32.0
    %v39 = vmul.f32 %v34, %v38
    %v40 = vmul.f32 %v37, %v38
    %v41 = vsub.f32 %v29, %v39
    %v42 = vsub.f32 %v30, %v40
    %v43 = vmul.f32 %v41, %v41
    %v44 = vmul.f32 %v42, %v42
    %v45 = vsel %vm31, %v43, 0.0
    %46 = vadd.xlane.f32.xlu0 %v45
    %v47 = vpop.xlane.xlu0 %46
    %v48 = vsel %vm31, %v44, 0.0
    %49 = vadd.xlane.f32.xlu0 %v48
    %v50 = vpop.xlane.xlu0 %49
    %v51 = vmul.f32 %v47, 0.032258064
    %v52 = vmul.f32 %v50, 0.032258064
    %vm53 = vcmp.gt.f32.partialorder %v51, 0.0
    %vm54 = vcmp.gt.f32.partialorder %v52, 0.0
    %v55 = vrsqrt.pop %v51
    %v56 = vrsqrt.pop %v52
    %v57 = vsel %vm53, %v55, 0.0
    %v58 = vsel %vm54, %v56, 0.0
    %v59 = vld [vmem:[%s1] sm:$0x1]
    %v61 = vlaneseq
    %v62 = vshrl.u32 %v61, 7
    %v63 = vsub.s32 0, %v62
    %v64 = vrot.slane %v59, %v63
    %v66 = vmul.f32 %v64, %v41
    %v67 = vmul.f32 %v64, %v42
    %v68 = vmul.f32 %v66, %v57
    %v69 = vmul.f32 %v67, %v58
    %v70 = vld [vmem:[%s2] sm:$0x1]
    %v72 = vlaneseq
    %v73 = vshrl.u32 %v72, 7
    %v74 = vsub.s32 0, %v73
    %v75 = vrot.slane %v70, %v74
    %v77 = vadd.f32 %v68, %v75
    %v78 = vadd.f32 %v69, %v75
    %79 = vst.msk [vmem:[#allocation5] sm:$0xff] %vm31, %v77
    %80 = vst.msk [vmem:[#allocation5 + $0x8] sm:$0xff] %vm31, %v78
    // Predicated region
    $region18: #{tpu_custom_call.1} parent=1 // pred_check
      _
    $region19: #{tpu_custom_call.1} parent=1 // pred_check_branch
      %82 = sbr.rel (0) target = $region21
    $region20: #{tpu_custom_call.1} parent=1 // pred_region
      %s84 = ssub.s32 256, 256
      %85 = vsyncadd [#allocation4], %s84
      %s86 = sshll.u32 [#allocation5], 4
      %s87 = int_to_ptr.vmem [resolvable:$true] %s86
      %92 = dma.vmem_to_hbm [thread:$0]  %s87, 256, %s3, [#allocation4], 128, 128, 8
    $region21: #{tpu_custom_call.1} parent=1 // pred_fallthru
      _
    // Predicated region
    $region22: #{tpu_custom_call.1} parent=1 // pred_check
      _
    $region23: #{tpu_custom_call.1} parent=1 // pred_check_branch
      %94 = sbr.rel (0) target = $region25
    $region24: #{tpu_custom_call.1} parent=1 // pred_region
      %95 = dma.done [#allocation4], 256
    $region25: #{tpu_custom_call.1} parent=1 // pred_fallthru
      _
    %96 = vsyncpa [#allocation3], 1
    %97 = vsyncpa [#allocation4], 1

</llo_original>
